<compile_context>
chip_gen: v7x
topology: tpu7x:2x2x1
jax: 0.10.0
libtpu: 0.0.40
codegen_flags: <defaults>
</compile_context>

<pallas_src>
import jax
import jax.numpy as jnp
from jax import lax
from jax.experimental import pallas as pl
from jax.experimental.pallas import tpu as pltpu


def _mixa_kernel(x_ref, skin_ref, out_ref, att_ref):
    # x_ref:    (1, C, Tblk, WHp)
    # skin_ref: (1, Tblk, WHp)
    # out_ref:  (1, C, Tblk, WHp)
    # att_ref:  (1, Tblk, WHp)
    C = x_ref.shape[1]

    # Channel reduction over per-channel slabs: (C-1) full-slab VPU add/max
    # ops, re-loading each channel from VMEM (3 vld slots/cycle, nearly free)
    # instead of holding the whole (C, Tblk, WHp) block live.
    x0 = x_ref[0, 0]                                   # (Tblk, WHp)

    def reduce_body(c, carry):
        s, mx = carry
        xc = x_ref[0, c]
        return s + xc, jnp.maximum(mx, xc)

    sum_x, max_x = lax.fori_loop(1, C, reduce_body, (x0, x0), unroll=True)
    avg = sum_x * (1.0 / C)                            # (Tblk, WHp)

    fusion = jax.nn.sigmoid(avg) + jax.nn.sigmoid(max_x) + skin_ref[0]

    # Softmax over the spatial (lane) axis, per time row.
    row_max = jnp.max(fusion, axis=-1, keepdims=True)  # (Tblk, 1)
    e = jnp.exp(fusion - row_max)
    denom = jnp.sum(e, axis=-1, keepdims=True)
    # approx=True -> EUP vrcp slot (otherwise idle); ~1e-4 relative error on
    # the softmax normalisation (documented for consumers of `att`).
    att = e * pl.reciprocal(denom, approx=True)        # (Tblk, WHp)

    att_ref[0] = att.astype(att_ref.dtype)

    def write_body(c, carry):
        out_ref[0, c] = (x_ref[0, c] * att).astype(out_ref.dtype)
        return carry

    lax.fori_loop(0, C, write_body, 0, unroll=True)


def _cdiv(a, b):
    return (a + b - 1) // b


def _vmem_capacity_bytes():
    """Per-core VMEM capacity; defensive fallback to the smallest (v7x)."""
    try:
        info = pltpu.get_tpu_info()
        cap = getattr(info, "vmem_capacity_bytes", None)
        if cap:
            return int(cap)
    except Exception:
        pass
    return 64 << 20


def _pick_time_block(T, per_t_bytes, target_bytes):
    """Pick a T-chunk (~target_bytes per x block) that is a multiple of 8 or T."""
    t_target = int(max(1, target_bytes // max(per_t_bytes, 1)))
    if t_target >= T:
        return T
    t8 = max(8, (t_target // 8) * 8)
    if t8 >= T:
        return T
    # Prefer a multiple of 8 that divides T exactly (no ragged tail block).
    for t in range(t8, 7, -8):
        if T % t == 0:
            return t
    # Otherwise accept a ragged final block: grid uses cdiv, padded T rows are
    # independent per-row work and their writeback is masked off by Pallas.
    return t8


def mixa_module(x, skin):
    """x: (B, C, T, W, H) float32, skin: (B, T, W, H) float32.
    Returns (out (B, C, T, W, H), attention (B, T, W, H))."""
    B, C, T, W, H = x.shape
    WH = W * H
    itemsize = jnp.dtype(x.dtype).itemsize

    # Lane-dense last dim: pad W*H up to a multiple of 128 so stores are
    # unmasked full-lane vst.  Padded skin lanes get a huge negative bias so
    # the softmax assigns them exactly zero weight; padded x lanes are zero.
    WH_pad = max(128, _cdiv(WH, 128) * 128)
    x_r = x.reshape(B, C, T, WH)
    skin_r = skin.reshape(B, T, WH)
    if WH_pad != WH:
        x_r = jnp.pad(x_r, ((0, 0), (0, 0), (0, 0), (0, WH_pad - WH)))
        skin_r = jnp.pad(skin_r, ((0, 0), (0, 0), (0, WH_pad - WH)),
                         constant_values=-1e30)

    # Generation-aware block sizing: v7x (64 MiB per-core VMEM) gets ~2 MiB
    # x blocks; v5e/v6e (128 MiB) get ~4 MiB blocks.
    vmem_cap = _vmem_capacity_bytes()
    small_vmem = vmem_cap <= (64 << 20)
    x_block_target = (2 << 20) if small_vmem else (4 << 20)

    per_t_bytes = C * WH_pad * itemsize
    tblk = _pick_time_block(T, per_t_bytes, x_block_target)

    # Guarantee >= 2 parallel grid steps so both v7x TensorCores are fed
    # (negligible extra per-step overhead on single-TC chips).
    MIN_GRID_STEPS = 2
    while tblk > 8 and B * _cdiv(T, tblk) < MIN_GRID_STEPS:
        new_tblk = max(8, ((tblk // 2) // 8) * 8)
        if new_tblk == tblk:
            break
        tblk = new_tblk

    nt = _cdiv(T, tblk)
    grid = (B, nt)

    x_block_bytes = C * tblk * WH_pad * itemsize
    aux_block_bytes = tblk * WH_pad * itemsize
    # Double-buffered x in/out + skin/att buffers + reduce/softmax temporaries
    # + compiler headroom; clamped to stay well inside this chip's VMEM.
    needed = 4 * x_block_bytes + 10 * aux_block_bytes + (6 << 20)
    vmem_limit = int(min(max(needed, 32 << 20),
                         max(32 << 20, min(vmem_cap // 2, 64 << 20))))

    cost = pl.CostEstimate(
        flops=int((3 * C + 8) * B * T * WH_pad),
        transcendentals=int(3 * B * T * WH_pad + B * T),
        bytes_accessed=int((2 * B * C * T + 2 * B * T) * WH_pad * itemsize),
    )

    out_r, att_r = pl.pallas_call(
        _mixa_kernel,
        out_shape=(
            jax.ShapeDtypeStruct((B, C, T, WH_pad), x.dtype),
            jax.ShapeDtypeStruct((B, T, WH_pad), x.dtype),
        ),
        grid_spec=pltpu.PrefetchScalarGridSpec(
            num_scalar_prefetch=0,
            grid=grid,
            in_specs=[
                pl.BlockSpec((1, C, tblk, WH_pad), lambda b, t: (b, 0, t, 0)),
                pl.BlockSpec((1, tblk, WH_pad), lambda b, t: (b, t, 0)),
            ],
            out_specs=[
                pl.BlockSpec((1, C, tblk, WH_pad), lambda b, t: (b, 0, t, 0)),
                pl.BlockSpec((1, tblk, WH_pad), lambda b, t: (b, t, 0)),
            ],
        ),
        compiler_params=pltpu.CompilerParams(
            dimension_semantics=("parallel", "parallel"),
            vmem_limit_bytes=vmem_limit,
        ),
        cost_estimate=cost,
    )(x_r, skin_r)

    if WH_pad != WH:
        out_r = out_r[..., :WH]
        att_r = att_r[..., :WH]
    out = out_r.reshape(B, C, T, W, H)
    att = att_r.reshape(B, T, W, H)
    return out, att


def _mixa_reference(x, skin):
    B, C, T, W, H = x.shape
    b_twh_c = jnp.transpose(x.reshape(B, C, -1), (0, 2, 1))          # (B, TWH, C)
    avg = jax.nn.sigmoid(jnp.mean(b_twh_c, axis=-1)).reshape(B, T, W, H)
    mx = jax.nn.sigmoid(jnp.max(b_twh_c, axis=-1)).reshape(B, T, W, H)
    fusion = avg + mx + skin
    att = jax.nn.softmax(fusion.reshape(B, T, -1), axis=-1).reshape(B, T, W, H)
    out = x * att[:, None, :, :, :]
    return out, att


def _run_case(key, B, C, T, W, H):
    kx, ks = jax.random.split(key)
    x = jax.random.normal(kx, (B, C, T, W, H), dtype=jnp.float32)
    skin = jax.random.uniform(ks, (B, T, W, H), dtype=jnp.float32)

    out, att = mixa_module(x, skin)
    out = jax.block_until_ready(out)
    att = jax.block_until_ready(att)

    out_ref, att_ref = _mixa_reference(x, skin)
    # Tolerances allow for the EUP approximate-reciprocal in the softmax
    # (relative error well below 1e-3); everything else is exact f32 math.
    assert jnp.allclose(att, att_ref, atol=1e-4, rtol=1e-3)
    assert jnp.allclose(out, out_ref, atol=2e-4, rtol=1e-3)
    assert out.shape == (B, C, T, W, H) and att.shape == (B, T, W, H)


if __name__ == "__main__":
    # MixA_Module has no learned parameters; only inputs are needed.
    key = jax.random.PRNGKey(0)
    k1, k2 = jax.random.split(key)
    # Lane-dense case (W*H = 256).
    _run_case(k1, B=2, C=4, T=8, W=16, H=16)
    # Non-128-multiple spatial size (W*H = 49 -> lane-padded) with a ragged
    # time tail (T=12, Tblk=8) and the min-parallel-steps path (B=1).
    _run_case(k2, B=1, C=3, T=12, W=7, H=7)

    print("KERNEL_OK")
</pallas_src>

<mosaic_0001>
module attributes {stable_mosaic.version = 11 : i64} {
  func.func @_mixa_kernel(%arg0: i32, %arg1: i32, %arg2: memref<1x4x8x256xf32, #tpu.memory_space<vmem>>, %arg3: memref<1x8x256xf32, #tpu.memory_space<vmem>>, %arg4: memref<1x4x8x256xf32, #tpu.memory_space<vmem>>, %arg5: memref<1x8x256xf32, #tpu.memory_space<vmem>>) attributes {dimension_semantics = [#tpu.dimension_semantics<parallel>, #tpu.dimension_semantics<parallel>], iteration_bounds = array<i64: 2, 1>, scalar_prefetch = 0 : i64, scratch_operands = 0 : i64, tpu.core_type = #tpu.core_type<tc>, window_params = [{transform_indices = @transform_0, window_bounds = array<i64: 1, 4, 8, 256>}, {transform_indices = @transform_1, window_bounds = array<i64: 1, 8, 256>}, {transform_indices = @transform_2, window_bounds = array<i64: 1, 4, 8, 256>}, {transform_indices = @transform_3, window_bounds = array<i64: 1, 8, 256>}]} {
    %c0 = arith.constant 0 : index
    %c0_0 = arith.constant 0 : index
    %c0_1 = arith.constant 0 : index
    %c0_2 = arith.constant 0 : index
    %0 = vector.load %arg2[%c0, %c0_0, %c0_1, %c0_2] : memref<1x4x8x256xf32, #tpu.memory_space<vmem>>, vector<1x1x8x256xf32>
    %1 = vector.shape_cast %0 : vector<1x1x8x256xf32> to vector<8x256xf32>
    %c1_i32 = arith.constant 1 : i32
    %c0_3 = arith.constant 0 : index
    %2 = arith.index_cast %c1_i32 : i32 to index
    %c0_4 = arith.constant 0 : index
    %c0_5 = arith.constant 0 : index
    %3 = vector.load %arg2[%c0_3, %2, %c0_4, %c0_5] : memref<1x4x8x256xf32, #tpu.memory_space<vmem>>, vector<1x1x8x256xf32>
    %4 = vector.shape_cast %3 : vector<1x1x8x256xf32> to vector<8x256xf32>
    %5 = arith.addf %1, %4 : vector<8x256xf32>
    %6 = arith.maximumf %1, %4 : vector<8x256xf32>
    %c2_i32 = arith.constant 2 : i32
    %c0_6 = arith.constant 0 : index
    %7 = arith.index_cast %c2_i32 : i32 to index
    %c0_7 = arith.constant 0 : index
    %c0_8 = arith.constant 0 : index
    %8 = vector.load %arg2[%c0_6, %7, %c0_7, %c0_8] : memref<1x4x8x256xf32, #tpu.memory_space<vmem>>, vector<1x1x8x256xf32>
    %9 = vector.shape_cast %8 : vector<1x1x8x256xf32> to vector<8x256xf32>
    %10 = arith.addf %5, %9 : vector<8x256xf32>
    %11 = arith.maximumf %6, %9 : vector<8x256xf32>
    %c3_i32 = arith.constant 3 : i32
    %c0_9 = arith.constant 0 : index
    %12 = arith.index_cast %c3_i32 : i32 to index
    %c0_10 = arith.constant 0 : index
    %c0_11 = arith.constant 0 : index
    %13 = vector.load %arg2[%c0_9, %12, %c0_10, %c0_11] : memref<1x4x8x256xf32, #tpu.memory_space<vmem>>, vector<1x1x8x256xf32>
    %14 = vector.shape_cast %13 : vector<1x1x8x256xf32> to vector<8x256xf32>
    %15 = arith.addf %10, %14 : vector<8x256xf32>
    %16 = arith.maximumf %11, %14 : vector<8x256xf32>
    %c3_i32_12 = arith.constant 3 : i32
    %cst = arith.constant 2.500000e-01 : f32
    %17 = vector.broadcast %cst : f32 to vector<8x256xf32>
    %18 = arith.mulf %15, %17 : vector<8x256xf32>
    %19 = arith.negf %18 : vector<8x256xf32>
    %20 = math.exp %19 : vector<8x256xf32>
    %cst_13 = arith.constant 1.000000e+00 : f32
    %21 = vector.broadcast %cst_13 : f32 to vector<8x256xf32>
    %22 = arith.addf %21, %20 : vector<8x256xf32>
    %23 = arith.divf %21, %22 : vector<8x256xf32>
    %24 = arith.negf %16 : vector<8x256xf32>
    %25 = math.exp %24 : vector<8x256xf32>
    %cst_14 = arith.constant 1.000000e+00 : f32
    %26 = vector.broadcast %cst_14 : f32 to vector<8x256xf32>
    %27 = arith.addf %26, %25 : vector<8x256xf32>
    %28 = arith.divf %26, %27 : vector<8x256xf32>
    %29 = arith.addf %23, %28 : vector<8x256xf32>
    %c0_15 = arith.constant 0 : index
    %c0_16 = arith.constant 0 : index
    %c0_17 = arith.constant 0 : index
    %30 = vector.load %arg3[%c0_15, %c0_16, %c0_17] : memref<1x8x256xf32, #tpu.memory_space<vmem>>, vector<1x8x256xf32>
    %31 = vector.shape_cast %30 : vector<1x8x256xf32> to vector<8x256xf32>
    %32 = arith.addf %29, %31 : vector<8x256xf32>
    %cst_18 = arith.constant dense<0xFF800000> : vector<8xf32>
    %33 = vector.multi_reduction <maximumf>, %32, %cst_18 [1] : vector<8x256xf32> to vector<8xf32>
    %34 = vector.shape_cast %33 : vector<8xf32> to vector<8x1xf32>
    %35 = vector.broadcast %34 : vector<8x1xf32> to vector<8x256xf32>
    %36 = arith.subf %32, %35 : vector<8x256xf32>
    %37 = math.exp %36 : vector<8x256xf32>
    %cst_19 = arith.constant dense<0.000000e+00> : vector<8xf32>
    %38 = vector.multi_reduction <add>, %37, %cst_19 [1] : vector<8x256xf32> to vector<8xf32>
    %39 = vector.shape_cast %38 : vector<8xf32> to vector<8x1xf32>
    %40 = tpu.reciprocal %39 {approx = true} : vector<8x1xf32> -> vector<8x1xf32>
    %41 = vector.broadcast %40 : vector<8x1xf32> to vector<8x256xf32>
    %42 = arith.mulf %37, %41 : vector<8x256xf32>
    %c0_20 = arith.constant 0 : index
    %c0_21 = arith.constant 0 : index
    %c0_22 = arith.constant 0 : index
    %43 = vector.load %arg5[%c0_20, %c0_21, %c0_22] : memref<1x8x256xf32, #tpu.memory_space<vmem>>, vector<1x8x256xf32>
    %44 = vector.shape_cast %43 : vector<1x8x256xf32> to vector<8x256xf32>
    %45 = vector.shape_cast %42 : vector<8x256xf32> to vector<1x8x256xf32>
    tpu.vector_store %arg5[%c0_20, %c0_21, %c0_22], %45 {strides = array<i32>} : memref<1x8x256xf32, #tpu.memory_space<vmem>>, vector<1x8x256xf32>,
    %c0_i32 = arith.constant 0 : i32
    %c0_23 = arith.constant 0 : index
    %46 = arith.index_cast %c0_i32 : i32 to index
    %c0_24 = arith.constant 0 : index
    %c0_25 = arith.constant 0 : index
    %47 = vector.load %arg2[%c0_23, %46, %c0_24, %c0_25] : memref<1x4x8x256xf32, #tpu.memory_space<vmem>>, vector<1x1x8x256xf32>
    %48 = vector.shape_cast %47 : vector<1x1x8x256xf32> to vector<8x256xf32>
    %49 = arith.mulf %48, %42 : vector<8x256xf32>
    %c0_26 = arith.constant 0 : index
    %50 = arith.index_cast %c0_i32 : i32 to index
    %c0_27 = arith.constant 0 : index
    %c0_28 = arith.constant 0 : index
    %51 = vector.load %arg4[%c0_26, %50, %c0_27, %c0_28] : memref<1x4x8x256xf32, #tpu.memory_space<vmem>>, vector<1x1x8x256xf32>
    %52 = vector.shape_cast %51 : vector<1x1x8x256xf32> to vector<8x256xf32>
    %53 = vector.shape_cast %49 : vector<8x256xf32> to vector<1x1x8x256xf32>
    tpu.vector_store %arg4[%c0_26, %50, %c0_27, %c0_28], %53 {strides = array<i32>} : memref<1x4x8x256xf32, #tpu.memory_space<vmem>>, vector<1x1x8x256xf32>,
    %c1_i32_29 = arith.constant 1 : i32
    %c0_30 = arith.constant 0 : index
    %54 = arith.index_cast %c1_i32_29 : i32 to index
    %c0_31 = arith.constant 0 : index
    %c0_32 = arith.constant 0 : index
    %55 = vector.load %arg2[%c0_30, %54, %c0_31, %c0_32] : memref<1x4x8x256xf32, #tpu.memory_space<vmem>>, vector<1x1x8x256xf32>
    %56 = vector.shape_cast %55 : vector<1x1x8x256xf32> to vector<8x256xf32>
    %57 = arith.mulf %56, %42 : vector<8x256xf32>
    %c0_33 = arith.constant 0 : index
    %58 = arith.index_cast %c1_i32_29 : i32 to index
    %c0_34 = arith.constant 0 : index
    %c0_35 = arith.constant 0 : index
    %59 = vector.load %arg4[%c0_33, %58, %c0_34, %c0_35] : memref<1x4x8x256xf32, #tpu.memory_space<vmem>>, vector<1x1x8x256xf32>
    %60 = vector.shape_cast %59 : vector<1x1x8x256xf32> to vector<8x256xf32>
    %61 = vector.shape_cast %57 : vector<8x256xf32> to vector<1x1x8x256xf32>
    tpu.vector_store %arg4[%c0_33, %58, %c0_34, %c0_35], %61 {strides = array<i32>} : memref<1x4x8x256xf32, #tpu.memory_space<vmem>>, vector<1x1x8x256xf32>,
    %c2_i32_36 = arith.constant 2 : i32
    %c0_37 = arith.constant 0 : index
    %62 = arith.index_cast %c2_i32_36 : i32 to index
    %c0_38 = arith.constant 0 : index
    %c0_39 = arith.constant 0 : index
    %63 = vector.load %arg2[%c0_37, %62, %c0_38, %c0_39] : memref<1x4x8x256xf32, #tpu.memory_space<vmem>>, vector<1x1x8x256xf32>
    %64 = vector.shape_cast %63 : vector<1x1x8x256xf32> to vector<8x256xf32>
    %65 = arith.mulf %64, %42 : vector<8x256xf32>
    %c0_40 = arith.constant 0 : index
    %66 = arith.index_cast %c2_i32_36 : i32 to index
    %c0_41 = arith.constant 0 : index
    %c0_42 = arith.constant 0 : index
    %67 = vector.load %arg4[%c0_40, %66, %c0_41, %c0_42] : memref<1x4x8x256xf32, #tpu.memory_space<vmem>>, vector<1x1x8x256xf32>
    %68 = vector.shape_cast %67 : vector<1x1x8x256xf32> to vector<8x256xf32>
    %69 = vector.shape_cast %65 : vector<8x256xf32> to vector<1x1x8x256xf32>
    tpu.vector_store %arg4[%c0_40, %66, %c0_41, %c0_42], %69 {strides = array<i32>} : memref<1x4x8x256xf32, #tpu.memory_space<vmem>>, vector<1x1x8x256xf32>,
    %c3_i32_43 = arith.constant 3 : i32
    %c0_44 = arith.constant 0 : index
    %70 = arith.index_cast %c3_i32_43 : i32 to index
    %c0_45 = arith.constant 0 : index
    %c0_46 = arith.constant 0 : index
    %71 = vector.load %arg2[%c0_44, %70, %c0_45, %c0_46] : memref<1x4x8x256xf32, #tpu.memory_space<vmem>>, vector<1x1x8x256xf32>
    %72 = vector.shape_cast %71 : vector<1x1x8x256xf32> to vector<8x256xf32>
    %73 = arith.mulf %72, %42 : vector<8x256xf32>
    %c0_47 = arith.constant 0 : index
    %74 = arith.index_cast %c3_i32_43 : i32 to index
    %c0_48 = arith.constant 0 : index
    %c0_49 = arith.constant 0 : index
    %75 = vector.load %arg4[%c0_47, %74, %c0_48, %c0_49] : memref<1x4x8x256xf32, #tpu.memory_space<vmem>>, vector<1x1x8x256xf32>
    %76 = vector.shape_cast %75 : vector<1x1x8x256xf32> to vector<8x256xf32>
    %77 = vector.shape_cast %73 : vector<8x256xf32> to vector<1x1x8x256xf32>
    tpu.vector_store %arg4[%c0_47, %74, %c0_48, %c0_49], %77 {strides = array<i32>} : memref<1x4x8x256xf32, #tpu.memory_space<vmem>>, vector<1x1x8x256xf32>,
    %c4_i32 = arith.constant 4 : i32
    return
  }
  func.func @transform_0(%arg0: i32, %arg1: i32) -> (i32, i32, i32, i32) {
    %c0_i32 = arith.constant 0 : i32
    %c0_i32_0 = arith.constant 0 : i32
    %c0_i32_1 = arith.constant 0 : i32
    return %arg0, %c0_i32, %arg1, %c0_i32_0 : i32, i32, i32, i32
  }
  func.func @transform_1(%arg0: i32, %arg1: i32) -> (i32, i32, i32) {
    %c0_i32 = arith.constant 0 : i32
    %c0_i32_0 = arith.constant 0 : i32
    return %arg0, %arg1, %c0_i32 : i32, i32, i32
  }
  func.func @transform_2(%arg0: i32, %arg1: i32) -> (i32, i32, i32, i32) {
    %c0_i32 = arith.constant 0 : i32
    %c0_i32_0 = arith.constant 0 : i32
    %c0_i32_1 = arith.constant 0 : i32
    return %arg0, %c0_i32, %arg1, %c0_i32_0 : i32, i32, i32, i32
  }
  func.func @transform_3(%arg0: i32, %arg1: i32) -> (i32, i32, i32) {
    %c0_i32 = arith.constant 0 : i32
    %c0_i32_0 = arith.constant 0 : i32
    return %arg0, %arg1, %c0_i32 : i32, i32, i32
  }
}

</mosaic_0001>

<llo_original>
// kernel: tpu_custom_call.1
$region0: #{tpu_custom_call.1}
  #allocation0 [shape = 'u32[]', space=smem, size = 0x4, offset = 0x4, fixed_abs, tag = 'smem constant byte address 0x4 - core index']
  #allocation1 [shape = 'u32[144,128]{1,0:T(1,128)}', space=vmem, size = 0x12000, scoped, tag = 'internal scratch']
  %s0 = inlined_call_operand.hbm [shape: f32[2,4,8,256], index: 0, kind: input, shape index: {}]
  %s1 = inlined_call_operand.hbm [shape: f32[2,8,256], index: 1, kind: input, shape index: {}]
  %s2 = inlined_call_operand.hbm [shape: f32[2,4,8,256], index: 2, kind: output, shape index: {0}]
  %s3 = inlined_call_operand.hbm [shape: f32[2,8,256], index: 3, kind: output, shape index: {1}]
  %4 = xla_tuple %s2, %s3
  %s5 = sld [smem:[#allocation0]]
  $region57: #{tpu_custom_call.1} parent=0
    _
  %s7 = ssub.s32 1, %s5
  %s8 = scalar_select 0, %s7, %s5
  $region1: #{tpu_custom_call.1} parent=0
    #allocation2 [shape = 'u8[65536]{0}', space=vmem, size = 0x10000, scoped, tag = 'input window, operand 0']
    #allocation3 [shape = 's32[2]{0}', space=sflag, size = 0x8, scoped, tag = 'scoped memory for tpu_custom_call.1']
    #allocation4 [shape = 's32[2]{0}', space=sflag, size = 0x8, scoped, tag = 'scoped memory for tpu_custom_call.1']
    #allocation5 [shape = 'u8[16384]{0}', space=vmem, size = 0x4000, scoped, tag = 'input window, operand 1']
    #allocation6 [shape = 's32[2]{0}', space=sflag, size = 0x8, scoped, tag = 'scoped memory for tpu_custom_call.1']
    #allocation7 [shape = 'u8[65536]{0}', space=vmem, size = 0x10000, scoped, tag = 'output window, operand 0']
    #allocation8 [shape = 'u8[16384]{0}', space=vmem, size = 0x4000, scoped, tag = 'output window, operand 1']
    #allocation9 [shape = 's32[2]{0}', space=sflag, size = 0x8, scoped, tag = 'scoped memory for tpu_custom_call.1']
    %9 = vsyncpa [#allocation3], 0
    %s10 = scalar_lea.sflag [#allocation3], 1
    %11 = vsyncpa %s10, 0
    %12 = vsyncpa [#allocation6], 0
    %s13 = scalar_lea.sflag [#allocation6], 1
    %14 = vsyncpa %s13, 0
    %15 = vsyncpa [#allocation4], 0
    %s16 = scalar_lea.sflag [#allocation4], 1
    %17 = vsyncpa %s16, 0
    %18 = vsyncpa [#allocation9], 0
    %s19 = scalar_lea.sflag [#allocation9], 1
    %20 = vsyncpa %s19, 0
    loop: start=0, step=1, limit=4
    $region2: #{tpu_custom_call.1} parent=1 // loop_pre_header
      _
    $region3: #{tpu_custom_call.1} parent=1 // loop_header
      %s22 = sphi 0, %s26
      %p23 = scmp.ge.s32.totalorder %s22, 4
      %s29 = sphi 0, %s41
      %s30 = sphi 0, %s37
      %s31 = sphi 0, %s29
      %s32 = sphi 0, %s30
      %s33 = sphi 0, %s31
      %s34 = sphi 0, %s32
      %s46 = sphi 0, %s48
      %s49 = sphi 0, %s46
      %s50 = sphi 0, %s49
      %s66 = sphi 0, %s50
      %s74 = sphi 0, %s76
      %s77 = sphi 0, %s74
      %s78 = sphi 0, %s77
      %s94 = sphi 0, %s78
      %s102 = sphi 0, %s104
      %s105 = sphi 0, %s102
      %s106 = sphi 0, %s105
      %s122 = sphi 0, %s106
      %s130 = sphi 0, %s132
      %s133 = sphi 0, %s130
      %s134 = sphi 0, %s133
      %s150 = sphi 0, %s134
    $region4: #{tpu_custom_call.1} parent=1 // loop_header_branch
      %25 = sbr.rel (%p23) target = $region8
    $region5: #{tpu_custom_call.1} parent=1 // loop_body
      %s27 = ssub.s32 %s22, 1
      %s28 = ssub.s32 %s22, 2
      %s35 = sadd.s32 1, %s30
      %p36 = scmp.ge.s32.totalorder %s35, 1
      %s37 = scalar_select %p36, 0, %s35
      %s38 = sadd.s32 1, %s29
      %s39 = scalar_select %p36, %s38, %s29
      %p40 = scmp.ge.s32.totalorder %s39, 2
      %s41 = scalar_select %p40, 0, %s39
      %s42 = ssub.s32 %s29, %s41
      %s43 = ssub.s32 %s30, %s37
      %s44 = sor.u32 %s42, %s43
      %p45 = scmp.eq.s32.totalorder %s44, 0
      %s47 = sadd.s32 %s46, 1
      %s48 = scalar_select %p45, %s46, %s47
      %p51 = pneg %p45
      %p52 = scmp.eq.s32.totalorder %s22, 1
      %p53 = por %p51, %p52
      %p54 = scmp.ne.s32.totalorder %s46, %s49
      %p55 = scmp.eq.s32.totalorder %s22, 0
      %p56 = por %p54, %p55
      %p57 = scmp.ne.s32.totalorder %s46, %s49
      %p58 = scmp.eq.s32.totalorder %s27, 1
      %p59 = por %p57, %p58
      %p60 = scmp.ne.s32.totalorder %s49, %s50
      %p61 = scmp.eq.s32.totalorder %s27, 0
      %p62 = por %p60, %p61
      %p63 = scmp.ne.s32.totalorder %s49, %s50
      %p64 = scmp.eq.s32.totalorder %s28, 1
      %p65 = por %p63, %p64
      %p67 = scmp.ne.s32.totalorder %s50, %s66
      %p68 = scmp.eq.s32.totalorder %s28, 0
      %p69 = por %p67, %p68
      %s70 = ssub.s32 %s29, %s41
      %s71 = ssub.s32 %s30, %s37
      %s72 = sor.u32 %s70, %s71
      %p73 = scmp.eq.s32.totalorder %s72, 0
      %s75 = sadd.s32 %s74, 1
      %s76 = scalar_select %p73, %s74, %s75
      %p79 = pneg %p73
      %p80 = scmp.eq.s32.totalorder %s22, 1
      %p81 = por %p79, %p80
      %p82 = scmp.ne.s32.totalorder %s74, %s77
      %p83 = scmp.eq.s32.totalorder %s22, 0
      %p84 = por %p82, %p83
      %p85 = scmp.ne.s32.totalorder %s74, %s77
      %p86 = scmp.eq.s32.totalorder %s27, 1
      %p87 = por %p85, %p86
      %p88 = scmp.ne.s32.totalorder %s77, %s78
      %p89 = scmp.eq.s32.totalorder %s27, 0
      %p90 = por %p88, %p89
      %p91 = scmp.ne.s32.totalorder %s77, %s78
      %p92 = scmp.eq.s32.totalorder %s28, 1
      %p93 = por %p91, %p92
      %p95 = scmp.ne.s32.totalorder %s78, %s94
      %p96 = scmp.eq.s32.totalorder %s28, 0
      %p97 = por %p95, %p96
      %s98 = ssub.s32 %s29, %s41
      %s99 = ssub.s32 %s30, %s37
      %s100 = sor.u32 %s98, %s99
      %p101 = scmp.eq.s32.totalorder %s100, 0
      %s103 = sadd.s32 %s102, 1
      %s104 = scalar_select %p101, %s102, %s103
      %p107 = pneg %p101
      %p108 = scmp.eq.s32.totalorder %s22, 1
      %p109 = por %p107, %p108
      %p110 = scmp.ne.s32.totalorder %s102, %s105
      %p111 = scmp.eq.s32.totalorder %s22, 0
      %p112 = por %p110, %p111
      %p113 = scmp.ne.s32.totalorder %s102, %s105
      %p114 = scmp.eq.s32.totalorder %s27, 1
      %p115 = por %p113, %p114
      %p116 = scmp.ne.s32.totalorder %s105, %s106
      %p117 = scmp.eq.s32.totalorder %s27, 0
      %p118 = por %p116, %p117
      %p119 = scmp.ne.s32.totalorder %s105, %s106
      %p120 = scmp.eq.s32.totalorder %s28, 1
      %p121 = por %p119, %p120
      %p123 = scmp.ne.s32.totalorder %s106, %s122
      %p124 = scmp.eq.s32.totalorder %s28, 0
      %p125 = por %p123, %p124
      %s126 = ssub.s32 %s29, %s41
      %s127 = ssub.s32 %s30, %s37
      %s128 = sor.u32 %s126, %s127
      %p129 = scmp.eq.s32.totalorder %s128, 0
      %s131 = sadd.s32 %s130, 1
      %s132 = scalar_select %p129, %s130, %s131
      %p135 = pneg %p129
      %p136 = scmp.eq.s32.totalorder %s22, 1
      %p137 = por %p135, %p136
      %p138 = scmp.ne.s32.totalorder %s130, %s133
      %p139 = scmp.eq.s32.totalorder %s22, 0
      %p140 = por %p138, %p139
      %p141 = scmp.ne.s32.totalorder %s130, %s133
      %p142 = scmp.eq.s32.totalorder %s27, 1
      %p143 = por %p141, %p142
      %p144 = scmp.ne.s32.totalorder %s133, %s134
      %p145 = scmp.eq.s32.totalorder %s27, 0
      %p146 = por %p144, %p145
      %p147 = scmp.ne.s32.totalorder %s133, %s134
      %p148 = scmp.eq.s32.totalorder %s28, 1
      %p149 = por %p147, %p148
      %p151 = scmp.ne.s32.totalorder %s134, %s150
      %p152 = scmp.eq.s32.totalorder %s28, 0
      %p153 = por %p151, %p152
      %p154 = scmp.le.s32.totalorder 1, %s22
      %p155 = scmp.lt.s32.totalorder %s22, 3
      %p156 = pnand %p154, %p155
      %p157 = pneg %p156
      // Predicated region
      $region9: #{tpu_custom_call.1} parent=5 // pred_check
        _
      $region10: #{tpu_custom_call.1} parent=5 // pred_check_branch
        %159 = sbr.rel (%p156) target = $region12
      $region11: #{tpu_custom_call.1} parent=5 // pred_region
        %s160 = ssub.s32 %s22, 1
      $region12: #{tpu_custom_call.1} parent=5 // pred_fallthru
        _
      %p161 = scmp.lt.s32.totalorder %s22, 2
      // Predicated region
      $region13: #{tpu_custom_call.1} parent=5 // pred_check
        %p162 = pneg %p161
      $region14: #{tpu_custom_call.1} parent=5 // pred_check_branch
        %164 = sbr.rel (%p162) target = $region16
      $region15: #{tpu_custom_call.1} parent=5 // pred_region
        // Predicated region
        $region17: #{tpu_custom_call.1} parent=15 // pred_check
          %p165 = pneg %p56
        $region18: #{tpu_custom_call.1} parent=15 // pred_check_branch
          %167 = sbr.rel (%p165) target = $region20
        $region19: #{tpu_custom_call.1} parent=15 // pred_region
          %s168 = sand.u32 %s46, 1
          %s169 = scalar_lea.sflag [#allocation3], %s168
          %s170 = sand.u32 %s46, 1
          %s171 = smul.addr %s170, 64
          %s172 = scalar_lea.vmem [#allocation2], %s171
          %s174 = ssub.s32 1024, 1024
          %175 = vsyncadd %s169, %s174
          %s176 = smul.addr %s30, 2
          %s177 = smul.addr %s29, 8
          %s178 = sadd.s32 %s176, %s177
          %s179 = smul.addr %s178, 128
          %s180 = scalar_lea.hbm %s0, %s179
          %s181 = sshll.u32 %s172, 4
          %s182 = int_to_ptr.vmem [resolvable:$true] %s181
          %187 = dma.hbm_to_vmem [thread:$0]  %s180, 1024, %s182, %s169, 256, 256, 16
        $region20: #{tpu_custom_call.1} parent=15 // pred_fallthru
          _
        // Predicated region
        $region21: #{tpu_custom_call.1} parent=15 // pred_check
          %p188 = pneg %p84
        $region22: #{tpu_custom_call.1} parent=15 // pred_check_branch
          %190 = sbr.rel (%p188) target = $region24
        $region23: #{tpu_custom_call.1} parent=15 // pred_region
          %s191 = sand.u32 %s74, 1
          %s192 = scalar_lea.sflag [#allocation6], %s191
          %s193 = sand.u32 %s74, 1
          %s194 = smul.addr %s193, 16
          %s195 = scalar_lea.vmem [#allocation5], %s194
          %s197 = ssub.s32 256, 256
          %198 = vsyncadd %s192, %s197
          %s199 = smul.addr %s30, 2
          %s200 = smul.addr %s29, 2
          %s201 = sadd.s32 %s199, %s200
          %s202 = smul.addr %s201, 128
          %s203 = scalar_lea.hbm %s1, %s202
          %s205 = sshll.u32 %s195, 4
          %s206 = int_to_ptr.vmem [resolvable:$true] %s205
          %208 = dma.hbm_to_vmem [thread:$0]  %s203, 256, %s206, %s192
        $region24: #{tpu_custom_call.1} parent=15 // pred_fallthru
          _
      $region16: #{tpu_custom_call.1} parent=5 // pred_fallthru
        _
      %p209 = scmp.le.s32.totalorder 1, %s22
      %p210 = scmp.lt.s32.totalorder %s22, 3
      %p211 = pnand %p209, %p210
      %p212 = pneg %p211
      // Predicated region
      $region25: #{tpu_custom_call.1} parent=5 // pred_check
        _
      $region26: #{tpu_custom_call.1} parent=5 // pred_check_branch
        %214 = sbr.rel (%p211) target = $region28
      $region27: #{tpu_custom_call.1} parent=5 // pred_region
        %s215 = ssub.s32 %s22, 1
        %s216 = sand.u32 %s49, 1
        %s217 = scalar_lea.sflag [#allocation3], %s216
        %s218 = sand.u32 %s49, 1
        %s219 = smul.addr %s218, 64
        %s220 = scalar_lea.vmem [#allocation2], %s219
        // Predicated region
        $region29: #{tpu_custom_call.1} parent=27 // pred_check
          %p221 = pneg %p62
        $region30: #{tpu_custom_call.1} parent=27 // pred_check_branch
          %223 = sbr.rel (%p221) target = $region32
        $region31: #{tpu_custom_call.1} parent=27 // pred_region
          %224 = dma.done %s217, 1024
        $region32: #{tpu_custom_call.1} parent=27 // pred_fallthru
          _
        %s225 = sand.u32 %s77, 1
        %s226 = scalar_lea.sflag [#allocation6], %s225
        %s227 = sand.u32 %s77, 1
        %s228 = smul.addr %s227, 16
        %s229 = scalar_lea.vmem [#allocation5], %s228
        // Predicated region
        $region33: #{tpu_custom_call.1} parent=27 // pred_check
          %p230 = pneg %p90
        $region34: #{tpu_custom_call.1} parent=27 // pred_check_branch
          %232 = sbr.rel (%p230) target = $region36
        $region35: #{tpu_custom_call.1} parent=27 // pred_region
          %233 = dma.done %s226, 256
        $region36: #{tpu_custom_call.1} parent=27 // pred_fallthru
          _
        %s234 = sand.u32 %s49, 1
        %s235 = scalar_lea.sflag [#allocation3], %s234
        %s236 = sand.u32 %s49, 1
        %s237 = smul.addr %s236, 64
        %s238 = scalar_lea.vmem [#allocation2], %s237
        %p239 = pneg %p62
        %p240 = pneg %p59
        %s241 = sand.u32 %s77, 1
        %s242 = scalar_lea.sflag [#allocation6], %s241
        %s243 = sand.u32 %s77, 1
        %s244 = smul.addr %s243, 16
        %s245 = scalar_lea.vmem [#allocation5], %s244
        %p246 = pneg %p90
        %p247 = pneg %p87
        %p248 = pneg %p118
        %p249 = pneg %p115
        %s250 = sand.u32 %s105, 1
        %s251 = scalar_lea.sflag [#allocation4], %s250
        %s252 = sand.u32 %s105, 1
        %s253 = smul.addr %s252, 64
        %s254 = scalar_lea.vmem [#allocation7], %s253
        %p255 = pneg %p146
        %p256 = pneg %p143
        %s257 = sand.u32 %s133, 1
        %s258 = scalar_lea.sflag [#allocation9], %s257
        %s259 = sand.u32 %s133, 1
        %s260 = smul.addr %s259, 16
        %s261 = scalar_lea.vmem [#allocation8], %s260
        %v262 = vld [vmem:[%s220] sm:$0xff]
        %v263 = vld [vmem:[%s220 + $0x8] sm:$0xff]
        %s264 = scalar_lea.vmem %s220, 16 [#allocation2]
        %v265 = vld [vmem:[%s264] sm:$0xff]
        %v266 = vld [vmem:[%s264 + $0x8] sm:$0xff]
        %v267 = vadd.f32 %v262, %v265
        %v268 = vadd.f32 %v263, %v266
        %v269 = vmax.f32 %v262, %v265
        %v270 = vmax.f32 %v263, %v266
        %s271 = scalar_lea.vmem %s220, 32 [#allocation2]
        %v272 = vld [vmem:[%s271] sm:$0xff]
        %v273 = vld [vmem:[%s271 + $0x8] sm:$0xff]
        %v274 = vadd.f32 %v267, %v272
        %v275 = vadd.f32 %v268, %v273
        %v276 = vmax.f32 %v269, %v272
        %v277 = vmax.f32 %v270, %v273
        %s278 = scalar_lea.vmem %s220, 48 [#allocation2]
        %v279 = vld [vmem:[%s278] sm:$0xff]
        %v280 = vld [vmem:[%s278 + $0x8] sm:$0xff]
        %v281 = vadd.f32 %v274, %v279
        %v282 = vadd.f32 %v275, %v280
        %v283 = vmax.f32 %v276, %v279
        %v284 = vmax.f32 %v277, %v280
        %v285 = vmul.f32 %v281, 0.25
        %v286 = vmul.f32 %v282, 0.25
        %v287 = vxor.u32 %v285, 2147483648
        %v288 = vxor.u32 %v286, 2147483648
        %v289 = vmul.f32 %v287, 1.442695
        %v290 = vpow.pop %v289
        %v291 = vmul.f32 %v288, 1.442695
        %v292 = vpow.pop %v291
        %v293 = vadd.f32 %v290, 1.0
        %v294 = vadd.f32 %v292, 1.0
        %v295 = vrcp.pop %v293
        %v296 = vmul.f32 1.0, %v295
        %v297 = vrcp.pop %v294
        %v298 = vmul.f32 1.0, %v297
        %v299 = vxor.u32 %v283, 2147483648
        %v300 = vxor.u32 %v284, 2147483648
        %v301 = vmul.f32 %v299, 1.442695
        %v302 = vpow.pop %v301
        %v303 = vmul.f32 %v300, 1.442695
        %v304 = vpow.pop %v303
        %v305 = vadd.f32 %v302, 1.0
        %v306 = vadd.f32 %v304, 1.0
        %v307 = vrcp.pop %v305
        %v308 = vmul.f32 1.0, %v307
        %v309 = vrcp.pop %v306
        %v310 = vmul.f32 1.0, %v309
        %v311 = vadd.f32 %v296, %v308
        %v312 = vadd.f32 %v298, %v310
        %v313 = vld [vmem:[%s229] sm:$0xff]
        %v314 = vld [vmem:[%s229 + $0x8] sm:$0xff]
        %v315 = vadd.f32 %v311, %v313
        %v316 = vadd.f32 %v312, %v314
        %v317 = vmax.f32 %v315, %v316
        %318 = vmax.xlane.f32.xlu0 %v317
        %v319 = vpop.xlane.xlu0 %318
        %v320 = vsub.f32 %v315, %v319
        %v321 = vsub.f32 %v316, %v319
        %v322 = vmul.f32 %v320, 1.442695
        %v323 = vpow.pop %v322
        %v324 = vmul.f32 %v321, 1.442695
        %v325 = vpow.pop %v324
        %v326 = vadd.f32 %v323, %v325
        %327 = vadd.xlane.f32.xlu0 %v326
        %v328 = vpop.xlane.xlu0 %327
        %v329 = vrcp.pop %v328
        %v330 = vmul.f32 %v323, %v329
        %v331 = vmul.f32 %v325, %v329
        %332 = vst [vmem:[%s261] sm:$0xff] %v330
        %333 = vst [vmem:[%s261 + $0x8] sm:$0xff] %v331
        %v334 = vld [vmem:[%s220] sm:$0xff]
        %v335 = vld [vmem:[%s220 + $0x8] sm:$0xff]
        %v336 = vmul.f32 %v334, %v330
        %v337 = vmul.f32 %v335, %v331
        %338 = vst [vmem:[%s254] sm:$0xff] %v336
        %339 = vst [vmem:[%s254 + $0x8] sm:$0xff] %v337
        %v340 = vld [vmem:[%s264] sm:$0xff]
        %v341 = vld [vmem:[%s264 + $0x8] sm:$0xff]
        %v342 = vmul.f32 %v340, %v330
        %v343 = vmul.f32 %v341, %v331
        %s344 = scalar_lea.vmem %s254, 16 [#allocation7]
        %345 = vst [vmem:[%s344] sm:$0xff] %v342
        %346 = vst [vmem:[%s344 + $0x8] sm:$0xff] %v343
        %v347 = vld [vmem:[%s271] sm:$0xff]
        %v348 = vld [vmem:[%s271 + $0x8] sm:$0xff]
        %v349 = vmul.f32 %v347, %v330
        %v350 = vmul.f32 %v348, %v331
        %s351 = scalar_lea.vmem %s254, 32 [#allocation7]
        %352 = vst [vmem:[%s351] sm:$0xff] %v349
        %353 = vst [vmem:[%s351 + $0x8] sm:$0xff] %v350
        %v354 = vld [vmem:[%s278] sm:$0xff]
        %v355 = vld [vmem:[%s278 + $0x8] sm:$0xff]
        %v356 = vmul.f32 %v354, %v330
        %v357 = vmul.f32 %v355, %v331
        %s358 = scalar_lea.vmem %s254, 48 [#allocation7]
        %359 = vst [vmem:[%s358] sm:$0xff] %v356
        %360 = vst [vmem:[%s358 + $0x8] sm:$0xff] %v357
        %s361 = sand.u32 %s105, 1
        %s362 = scalar_lea.sflag [#allocation4], %s361
        %s363 = sand.u32 %s105, 1
        %s364 = smul.addr %s363, 64
        %s365 = scalar_lea.vmem [#allocation7], %s364
        %s366 = sand.u32 %s133, 1
        %s367 = scalar_lea.sflag [#allocation9], %s366
        %s368 = sand.u32 %s133, 1
        %s369 = smul.addr %s368, 16
        %s370 = scalar_lea.vmem [#allocation8], %s369
        // Predicated region
        $region37: #{tpu_custom_call.1} parent=27 // pred_check
          %p371 = pneg %p115
        $region38: #{tpu_custom_call.1} parent=27 // pred_check_branch
          %373 = sbr.rel (%p371) target = $region40
        $region39: #{tpu_custom_call.1} parent=27 // pred_region
          %s375 = ssub.s32 1024, 1024
          %376 = vsyncadd %s362, %s375
          %s377 = smul.addr %s32, 2
          %s378 = smul.addr %s31, 8
          %s379 = sadd.s32 %s377, %s378
          %s380 = smul.addr %s379, 128
          %s381 = scalar_lea.hbm %s2, %s380
          %s382 = sshll.u32 %s365, 4
          %s383 = int_to_ptr.vmem [resolvable:$true] %s382
          %388 = dma.vmem_to_hbm [thread:$0]  %s383, 1024, %s381, %s362, 256, 256, 16
        $region40: #{tpu_custom_call.1} parent=27 // pred_fallthru
          _
        // Predicated region
        $region41: #{tpu_custom_call.1} parent=27 // pred_check
          %p389 = pneg %p143
        $region42: #{tpu_custom_call.1} parent=27 // pred_check_branch
          %391 = sbr.rel (%p389) target = $region44
        $region43: #{tpu_custom_call.1} parent=27 // pred_region
          %s393 = ssub.s32 256, 256
          %394 = vsyncadd %s367, %s393
          %s395 = smul.addr %s32, 2
          %s396 = smul.addr %s31, 2
          %s397 = sadd.s32 %s395, %s396
          %s398 = smul.addr %s397, 128
          %s399 = scalar_lea.hbm %s3, %s398
          %s401 = sshll.u32 %s370, 4
          %s402 = int_to_ptr.vmem [resolvable:$true] %s401
          %404 = dma.vmem_to_hbm [thread:$0]  %s402, 256, %s399, %s367
        $region44: #{tpu_custom_call.1} parent=27 // pred_fallthru
          _
      $region28: #{tpu_custom_call.1} parent=5 // pred_fallthru
        _
      %p405 = scmp.le.s32.totalorder 2, %s22
      // Predicated region
      $region45: #{tpu_custom_call.1} parent=5 // pred_check
        %p406 = pneg %p405
      $region46: #{tpu_custom_call.1} parent=5 // pred_check_branch
        %408 = sbr.rel (%p406) target = $region48
      $region47: #{tpu_custom_call.1} parent=5 // pred_region
        %s409 = ssub.s32 %s22, 2
        // Predicated region
        $region49: #{tpu_custom_call.1} parent=47 // pred_check
          %p410 = pneg %p121
        $region50: #{tpu_custom_call.1} parent=47 // pred_check_branch
          %412 = sbr.rel (%p410) target = $region52
        $region51: #{tpu_custom_call.1} parent=47 // pred_region
          %s413 = sand.u32 %s106, 1
          %s414 = scalar_lea.sflag [#allocation4], %s413
          %s415 = sand.u32 %s106, 1
          %s416 = smul.addr %s415, 64
          %s417 = scalar_lea.vmem [#allocation7], %s416
          %418 = dma.done %s414, 1024
        $region52: #{tpu_custom_call.1} parent=47 // pred_fallthru
          _
        // Predicated region
        $region53: #{tpu_custom_call.1} parent=47 // pred_check
          %p419 = pneg %p149
        $region54: #{tpu_custom_call.1} parent=47 // pred_check_branch
          %421 = sbr.rel (%p419) target = $region56
        $region55: #{tpu_custom_call.1} parent=47 // pred_region
          %s422 = sand.u32 %s134, 1
          %s423 = scalar_lea.sflag [#allocation9], %s422
          %s424 = sand.u32 %s134, 1
          %s425 = smul.addr %s424, 16
          %s426 = scalar_lea.vmem [#allocation8], %s425
          %427 = dma.done %s423, 256
        $region56: #{tpu_custom_call.1} parent=47 // pred_fallthru
          _
      $region48: #{tpu_custom_call.1} parent=5 // pred_fallthru
        _
    $region6: #{tpu_custom_call.1} parent=1 // loop_footer
      %s26 = sadd.s32 1, %s22
    $region7: #{tpu_custom_call.1} parent=1 // loop_footer_branch
      %21 = sbr.rel target = $region3
    $region8: #{tpu_custom_call.1} parent=1 // loop_exit
      _
    %428 = vsyncpa [#allocation3], 1
    %s429 = scalar_lea.sflag [#allocation3], 1
    %430 = vsyncpa %s429, 1
    %431 = vsyncpa [#allocation6], 1
    %s432 = scalar_lea.sflag [#allocation6], 1
    %433 = vsyncpa %s432, 1
    %434 = vsyncpa [#allocation4], 1
    %s435 = scalar_lea.sflag [#allocation4], 1
    %436 = vsyncpa %s435, 1
    %437 = vsyncpa [#allocation9], 1
    %s438 = scalar_lea.sflag [#allocation9], 1
    %439 = vsyncpa %s438, 1

</llo_original>
